<compile_context>
chip_gen: v7x
topology: tpu7x:2x2x1
jax: 0.10.0
libtpu: 0.0.40
codegen_flags: <defaults>
</compile_context>

<pallas_src>
import jax
import jax.numpy as jnp
from jax.experimental import pallas as pl
from jax.experimental.pallas import tpu as pltpu


def _round_up(n, m):
    return (n + m - 1) // m * m


def _pad_to(a, shape):
    pads = [(0, s - d) for d, s in zip(a.shape, shape)]
    return jnp.pad(a, pads)


def rnn_kernel(len_smem,                               # [B_pad] int32 (scalar prefetch, SMEM)
               x_ref, lenv_ref, xlast_ref,             # [T,Bt,E] bf16, [Bt,1] i32, [Bt,E] bf16
               wih_f_ref, whh_f_ref, b_f_ref,          # [E,H] bf16, [H,H] bf16, [1,H] f32
               wih_b_ref, b_b_ref,                     # [E,H] bf16, [1,H] f32
               wro_f_ref, wro_b_ref, bro_ref,          # [H,L] bf16, [H,L] bf16, [1,L] f32
               out_ref,                                # [Bt,L] f32
               u_scr):                                 # VMEM scratch [T,Bt,H] f32
    T, Bt, E = x_ref.shape
    H = whh_f_ref.shape[0]

    # ---- Hoisted input projection: one big [T*Bt, E] @ [E, H] MXU matmul. ----
    u = jnp.dot(x_ref[...].reshape(T * Bt, E), wih_f_ref[...],
                preferred_element_type=jnp.float32)
    u_scr[...] = (u + b_f_ref[...]).reshape(T, Bt, H)

    # Max true length inside this batch tile (lengths sorted descending, so it
    # is the first entry of the tile).  Skips fully-padded tail timesteps.
    max_len = len_smem[pl.program_id(0) * Bt]

    lengths = lenv_ref[...]                            # [Bt, 1] int32 per-row mask
    whh = whh_f_ref[...]                               # loop-invariant, loaded once

    def step(t, h):
        h_new = jnp.tanh(u_scr[t]
                         + jnp.dot(h.astype(jnp.bfloat16), whh,
                                   preferred_element_type=jnp.float32))
        # Freeze rows whose sequence already ended (packed-RNN semantics).
        return jnp.where(t < lengths, h_new, h)

    h_fwd = jax.lax.fori_loop(0, max_len, step,
                              jnp.zeros((Bt, H), jnp.float32))

    # Backward direction gathered at t = len-1: its first reverse step, so
    # h_prev = 0 and W_hh_backward intentionally does not appear.
    h_bwd = jnp.tanh(jnp.dot(xlast_ref[...], wih_b_ref[...],
                             preferred_element_type=jnp.float32) + b_b_ref[...])

    out_ref[...] = (jnp.dot(h_fwd.astype(jnp.bfloat16), wro_f_ref[...],
                            preferred_element_type=jnp.float32)
                    + jnp.dot(h_bwd.astype(jnp.bfloat16), wro_b_ref[...],
                              preferred_element_type=jnp.float32)
                    + bro_ref[...])


def rnn_model_forward(x, lengths, params, b_tile=8):
    """x: [B, T, E] float32 zero-padded (batch_first); lengths: [B] int32,
    sorted descending (pack_padded_sequence contract), all >= 1."""
    B, T, E = x.shape
    H = params["whh_f"].shape[0]
    L = params["b_ro"].shape[0]

    B_pad = _round_up(B, b_tile)
    E_pad = _round_up(E, 128)
    H_pad = _round_up(H, 128)
    L_pad = _round_up(L, 128)

    x = x.astype(jnp.float32)
    lengths = lengths.astype(jnp.int32)

    # Gather x at t = length-1 per sequence (backward-direction input) in the
    # wrapper; removes the x_last compare/select carry from the recurrence.
    x_last = x[jnp.arange(B), lengths - 1]                        # [B, E]

    # Pad to hardware tiles; MXU operands in bf16, biases stay f32.
    x_p = _pad_to(x, (B_pad, T, E_pad))
    # TODO(synk): for large T*B, grid over time chunks instead of this
    # wrapper-side transpose to avoid the extra HBM pass over x.
    x_tm = jnp.transpose(x_p, (1, 0, 2)).astype(jnp.bfloat16)     # [T, B_pad, E_pad]
    x_last_p = _pad_to(x_last, (B_pad, E_pad)).astype(jnp.bfloat16)

    lengths_p = _pad_to(lengths, (B_pad,))                        # SMEM prefetch
    lengths2d = lengths_p.reshape(B_pad, 1)                       # VMEM mask

    wih_f = _pad_to(params["wih_f"].T, (E_pad, H_pad)).astype(jnp.bfloat16)
    whh_f = _pad_to(params["whh_f"].T, (H_pad, H_pad)).astype(jnp.bfloat16)
    b_f = _pad_to((params["bih_f"] + params["bhh_f"]).reshape(1, H), (1, H_pad))
    wih_b = _pad_to(params["wih_b"].T, (E_pad, H_pad)).astype(jnp.bfloat16)
    b_b = _pad_to((params["bih_b"] + params["bhh_b"]).reshape(1, H), (1, H_pad))
    wro = params["w_ro"].T                                        # [2H, L]
    wro_f = _pad_to(wro[:H], (H_pad, L_pad)).astype(jnp.bfloat16)  # pre-split: no
    wro_b = _pad_to(wro[H:], (H_pad, L_pad)).astype(jnp.bfloat16)  # in-kernel slicing
    bro = _pad_to(params["b_ro"].reshape(1, L), (1, L_pad))

    grid = (B_pad // b_tile,)
    out = pl.pallas_call(
        rnn_kernel,
        out_shape=jax.ShapeDtypeStruct((B_pad, L_pad), jnp.float32),
        grid_spec=pltpu.PrefetchScalarGridSpec(
            num_scalar_prefetch=1,
            grid=grid,
            in_specs=[
                pl.BlockSpec((T, b_tile, E_pad), lambda i, lens: (0, i, 0)),
                pl.BlockSpec((b_tile, 1),        lambda i, lens: (i, 0)),
                pl.BlockSpec((b_tile, E_pad),    lambda i, lens: (i, 0)),
                pl.BlockSpec((E_pad, H_pad),     lambda i, lens: (0, 0)),
                pl.BlockSpec((H_pad, H_pad),     lambda i, lens: (0, 0)),
                pl.BlockSpec((1, H_pad),         lambda i, lens: (0, 0)),
                pl.BlockSpec((E_pad, H_pad),     lambda i, lens: (0, 0)),
                pl.BlockSpec((1, H_pad),         lambda i, lens: (0, 0)),
                pl.BlockSpec((H_pad, L_pad),     lambda i, lens: (0, 0)),
                pl.BlockSpec((H_pad, L_pad),     lambda i, lens: (0, 0)),
                pl.BlockSpec((1, L_pad),         lambda i, lens: (0, 0)),
            ],
            out_specs=pl.BlockSpec((b_tile, L_pad), lambda i, lens: (i, 0)),
            scratch_shapes=[pltpu.VMEM((T, b_tile, H_pad), jnp.float32)],
        ),
        compiler_params=pltpu.CompilerParams(
            dimension_semantics=("parallel",)),   # batch tiles -> v7x megacore
    )(lengths_p, x_tm, lengths2d, x_last_p, wih_f, whh_f, b_f,
      wih_b, b_b, wro_f, wro_b, bro)
    return out[:B, :L]


# ---------------------------- references ------------------------------------

def reference_forward_f32(x, lengths, params):
    """Pure-JAX f32 replica of the PyTorch forward (per-sequence loops)."""
    B, T, E = x.shape
    H = params["whh_f"].shape[0]
    outs = []
    for b in range(B):
        Lb = int(lengths[b])
        h = jnp.zeros((H,), jnp.float32)
        for t in range(Lb):
            h = jnp.tanh(params["wih_f"] @ x[b, t] + params["bih_f"]
                         + params["whh_f"] @ h + params["bhh_f"])
        h_bwd = jnp.tanh(params["wih_b"] @ x[b, Lb - 1]
                         + params["bih_b"] + params["bhh_b"])
        last = jnp.concatenate([h, h_bwd])
        outs.append(params["w_ro"] @ last + params["b_ro"])
    return jnp.stack(outs)


def reference_forward_bf16(x, lengths, params):
    """Same semantics, with the kernel's bf16-operand / f32-accumulate math."""
    bf = lambda a: a.astype(jnp.bfloat16)
    B, T, E = x.shape
    H = params["whh_f"].shape[0]
    wih_f, whh_f = bf(params["wih_f"].T), bf(params["whh_f"].T)
    b_f = params["bih_f"] + params["bhh_f"]
    wih_b = bf(params["wih_b"].T)
    b_b = params["bih_b"] + params["bhh_b"]
    wro = params["w_ro"].T
    wro_f, wro_b = bf(wro[:H]), bf(wro[H:])
    outs = []
    for b in range(B):
        Lb = int(lengths[b])
        h = jnp.zeros((H,), jnp.float32)
        for t in range(Lb):
            u = jnp.dot(bf(x[b, t]), wih_f, preferred_element_type=jnp.float32) + b_f
            h = jnp.tanh(u + jnp.dot(bf(h), whh_f, preferred_element_type=jnp.float32))
        h_bwd = jnp.tanh(jnp.dot(bf(x[b, Lb - 1]), wih_b,
                                 preferred_element_type=jnp.float32) + b_b)
        out = (jnp.dot(bf(h), wro_f, preferred_element_type=jnp.float32)
               + jnp.dot(bf(h_bwd), wro_b, preferred_element_type=jnp.float32)
               + params["b_ro"])
        outs.append(out)
    return jnp.stack(outs)


def init_params(key, embedding_dim, hidden_size, num_labels):
    """PyTorch-shaped init (U(-1/sqrt(fan), 1/sqrt(fan)))."""
    ks = jax.random.split(key, 10)
    k_rnn = 1.0 / jnp.sqrt(hidden_size)
    k_ro = 1.0 / jnp.sqrt(2 * hidden_size)
    u = lambda k, shape, s: jax.random.uniform(k, shape, jnp.float32, -s, s)
    return {
        "wih_f": u(ks[0], (hidden_size, embedding_dim), k_rnn),
        "whh_f": u(ks[1], (hidden_size, hidden_size), k_rnn),
        "bih_f": u(ks[2], (hidden_size,), k_rnn),
        "bhh_f": u(ks[3], (hidden_size,), k_rnn),
        "wih_b": u(ks[4], (hidden_size, embedding_dim), k_rnn),
        # whh_b exists in nn.RNN but cannot appear in the gathered output
        # (backward half at t=len-1 has h_prev = 0); intentionally unused.
        "whh_b": u(ks[5], (hidden_size, hidden_size), k_rnn),
        "bih_b": u(ks[6], (hidden_size,), k_rnn),
        "bhh_b": u(ks[7], (hidden_size,), k_rnn),
        "w_ro": u(ks[8], (num_labels, 2 * hidden_size), k_ro),
        "b_ro": u(ks[9], (num_labels,), k_ro),
    }


if __name__ == "__main__":
    B, T, E, H, NUM_LABELS = 2, 8, 16, 32, 8

    key = jax.random.PRNGKey(0)
    k_par, k_x = jax.random.split(key)
    params = init_params(k_par, E, H, NUM_LABELS)

    # Variable-length "sentences": lengths sorted descending, all >= 1
    # (pack_padded_sequence contract; zero-length sequences are not allowed).
    lengths = jnp.array([8, 5], dtype=jnp.int32)
    x = jax.random.normal(k_x, (B, T, E), jnp.float32)
    time_idx = jnp.arange(T)[None, :, None]
    x = jnp.where(time_idx < lengths[:, None, None], x, 0.0)      # zero padding

    out = rnn_model_forward(x, lengths, params)
    out = jax.block_until_ready(out)

    assert out.shape == (B, NUM_LABELS)
    ref_bf16 = reference_forward_bf16(x, lengths, params)
    assert jnp.allclose(out, ref_bf16, atol=2e-2, rtol=2e-2), (out, ref_bf16)
    ref_f32 = reference_forward_f32(x, lengths, params)
    assert jnp.max(jnp.abs(out - ref_f32)) < 0.1, (out, ref_f32)

    print("KERNEL_OK")
</pallas_src>

<mosaic_0001>
module attributes {stable_mosaic.version = 11 : i64} {
  func.func @rnn_kernel(%arg0: i32, %arg1: memref<8xi32, #tpu.memory_space<smem>>, %arg2: memref<8x8x128xbf16, #tpu.memory_space<vmem>>, %arg3: memref<8x1xi32, #tpu.memory_space<vmem>>, %arg4: memref<8x128xbf16, #tpu.memory_space<vmem>>, %arg5: memref<128x128xbf16, #tpu.memory_space<vmem>>, %arg6: memref<128x128xbf16, #tpu.memory_space<vmem>>, %arg7: memref<1x128xf32, #tpu.memory_space<vmem>>, %arg8: memref<128x128xbf16, #tpu.memory_space<vmem>>, %arg9: memref<1x128xf32, #tpu.memory_space<vmem>>, %arg10: memref<128x128xbf16, #tpu.memory_space<vmem>>, %arg11: memref<128x128xbf16, #tpu.memory_space<vmem>>, %arg12: memref<1x128xf32, #tpu.memory_space<vmem>>, %arg13: memref<8x128xf32, #tpu.memory_space<vmem>>, %arg14: memref<8x8x128xf32, #tpu.memory_space<vmem>>) attributes {dimension_semantics = [#tpu.dimension_semantics<parallel>], iteration_bounds = array<i64: 1>, scalar_prefetch = 1 : i64, scratch_operands = 1 : i64, tpu.core_type = #tpu.core_type<tc>, window_params = [{transform_indices = @transform_0, window_bounds = array<i64: 8, 8, 128>}, {transform_indices = @transform_1, window_bounds = array<i64: 8, 1>}, {transform_indices = @transform_2, window_bounds = array<i64: 8, 128>}, {pipeline_mode = #tpu.pipeline_mode<synchronous>, transform_indices = @transform_3, window_bounds = array<i64: 128, 128>}, {pipeline_mode = #tpu.pipeline_mode<synchronous>, transform_indices = @transform_4, window_bounds = array<i64: 128, 128>}, {pipeline_mode = #tpu.pipeline_mode<synchronous>, transform_indices = @transform_5, window_bounds = array<i64: 1, 128>}, {pipeline_mode = #tpu.pipeline_mode<synchronous>, transform_indices = @transform_6, window_bounds = array<i64: 128, 128>}, {pipeline_mode = #tpu.pipeline_mode<synchronous>, transform_indices = @transform_7, window_bounds = array<i64: 1, 128>}, {pipeline_mode = #tpu.pipeline_mode<synchronous>, transform_indices = @transform_8, window_bounds = array<i64: 128, 128>}, {pipeline_mode = #tpu.pipeline_mode<synchronous>, transform_indices = @transform_9, window_bounds = array<i64: 128, 128>}, {pipeline_mode = #tpu.pipeline_mode<synchronous>, transform_indices = @transform_10, window_bounds = array<i64: 1, 128>}, {transform_indices = @transform_11, window_bounds = array<i64: 8, 128>}]} {
    %c0 = arith.constant 0 : index
    %c0_0 = arith.constant 0 : index
    %c0_1 = arith.constant 0 : index
    %0 = vector.load %arg2[%c0, %c0_0, %c0_1] : memref<8x8x128xbf16, #tpu.memory_space<vmem>>, vector<8x8x128xbf16>
    %1 = vector.shape_cast %0 : vector<8x8x128xbf16> to vector<64x128xbf16>
    %c0_2 = arith.constant 0 : index
    %c0_3 = arith.constant 0 : index
    %2 = vector.load %arg5[%c0_2, %c0_3] : memref<128x128xbf16, #tpu.memory_space<vmem>>, vector<128x128xbf16>
    %cst = arith.constant dense<0.000000e+00> : vector<64x128xf32>
    %3 = tpu.matmul %1, %2, %cst {dimension_numbers = #tpu.dot_dimension_numbers<[1], [0], [0], [1], [0, 0, 1, 1], [], []>} : vector<64x128xbf16>, vector<128x128xbf16>, vector<64x128xf32> -> vector<64x128xf32>
    %c0_4 = arith.constant 0 : index
    %c0_5 = arith.constant 0 : index
    %4 = vector.load %arg7[%c0_4, %c0_5] : memref<1x128xf32, #tpu.memory_space<vmem>>, vector<1x128xf32>
    %5 = vector.broadcast %4 : vector<1x128xf32> to vector<64x128xf32>
    %6 = arith.addf %3, %5 : vector<64x128xf32>
    %7 = vector.shape_cast %6 : vector<64x128xf32> to vector<8x8x128xf32>
    %c0_6 = arith.constant 0 : index
    %c0_7 = arith.constant 0 : index
    %c0_8 = arith.constant 0 : index
    %8 = vector.load %arg14[%c0_6, %c0_7, %c0_8] : memref<8x8x128xf32, #tpu.memory_space<vmem>>, vector<8x8x128xf32>
    tpu.vector_store %arg14[%c0_6, %c0_7, %c0_8], %7 {strides = array<i32>} : memref<8x8x128xf32, #tpu.memory_space<vmem>>, vector<8x8x128xf32>,
    %c8_i32 = arith.constant 8 : i32
    %9 = arith.muli %arg0, %c8_i32 : i32
    %10 = arith.index_cast %9 : i32 to index
    %11 = memref.load %arg1[%10] : memref<8xi32, #tpu.memory_space<smem>>
    %c0_9 = arith.constant 0 : index
    %c0_10 = arith.constant 0 : index
    %12 = vector.load %arg3[%c0_9, %c0_10] : memref<8x1xi32, #tpu.memory_space<vmem>>, vector<8x1xi32>
    %c0_11 = arith.constant 0 : index
    %c0_12 = arith.constant 0 : index
    %13 = vector.load %arg6[%c0_11, %c0_12] : memref<128x128xbf16, #tpu.memory_space<vmem>>, vector<128x128xbf16>
    %cst_13 = arith.constant 0.000000e+00 : f32
    %14 = vector.broadcast %cst_13 : f32 to vector<8x128xf32>
    %c0_i32 = arith.constant 0 : i32
    %15 = arith.subi %11, %c0_i32 : i32
    %16 = arith.addi %c0_i32, %15 : i32
    %c1_i32 = arith.constant 1 : i32
    %17 = scf.for %arg15 = %c0_i32 to %16 step %c1_i32 iter_args(%arg16 = %14) -> (vector<8x128xf32>)  : i32 {
      %36 = arith.index_cast %arg15 : i32 to index
      %c0_31 = arith.constant 0 : index
      %c0_32 = arith.constant 0 : index
      %37 = vector.load %arg14[%36, %c0_31, %c0_32] : memref<8x8x128xf32, #tpu.memory_space<vmem>>, vector<1x8x128xf32>
      %38 = vector.shape_cast %37 : vector<1x8x128xf32> to vector<8x128xf32>
      %39 = arith.truncf %arg16 : vector<8x128xf32> to vector<8x128xbf16>
      %cst_33 = arith.constant dense<0.000000e+00> : vector<8x128xf32>
      %40 = tpu.matmul %39, %13, %cst_33 {dimension_numbers = #tpu.dot_dimension_numbers<[1], [0], [0], [1], [0, 0, 1, 1], [], []>} : vector<8x128xbf16>, vector<128x128xbf16>, vector<8x128xf32> -> vector<8x128xf32>
      %41 = arith.addf %38, %40 : vector<8x128xf32>
      %42 = math.tanh %41 : vector<8x128xf32>
      %43 = vector.broadcast %arg15 : i32 to vector<8x1xi32>
      %44 = arith.cmpi slt, %43, %12 : vector<8x1xi32>
      %45 = vector.shape_cast %44 : vector<8x1xi1> to vector<8x1xi1>
      %46 = vector.broadcast %45 : vector<8x1xi1> to vector<8x128xi1>
      %47 = arith.select %46, %42, %arg16 : vector<8x128xi1>, vector<8x128xf32>
      scf.yield %47 : vector<8x128xf32>
    }
    %c0_14 = arith.constant 0 : index
    %c0_15 = arith.constant 0 : index
    %18 = vector.load %arg4[%c0_14, %c0_15] : memref<8x128xbf16, #tpu.memory_space<vmem>>, vector<8x128xbf16>
    %c0_16 = arith.constant 0 : index
    %c0_17 = arith.constant 0 : index
    %19 = vector.load %arg8[%c0_16, %c0_17] : memref<128x128xbf16, #tpu.memory_space<vmem>>, vector<128x128xbf16>
    %cst_18 = arith.constant dense<0.000000e+00> : vector<8x128xf32>
    %20 = tpu.matmul %18, %19, %cst_18 {dimension_numbers = #tpu.dot_dimension_numbers<[1], [0], [0], [1], [0, 0, 1, 1], [], []>} : vector<8x128xbf16>, vector<128x128xbf16>, vector<8x128xf32> -> vector<8x128xf32>
    %c0_19 = arith.constant 0 : index
    %c0_20 = arith.constant 0 : index
    %21 = vector.load %arg9[%c0_19, %c0_20] : memref<1x128xf32, #tpu.memory_space<vmem>>, vector<1x128xf32>
    %22 = vector.broadcast %21 : vector<1x128xf32> to vector<8x128xf32>
    %23 = arith.addf %20, %22 : vector<8x128xf32>
    %24 = math.tanh %23 : vector<8x128xf32>
    %25 = arith.truncf %17 : vector<8x128xf32> to vector<8x128xbf16>
    %c0_21 = arith.constant 0 : index
    %c0_22 = arith.constant 0 : index
    %26 = vector.load %arg10[%c0_21, %c0_22] : memref<128x128xbf16, #tpu.memory_space<vmem>>, vector<128x128xbf16>
    %cst_23 = arith.constant dense<0.000000e+00> : vector<8x128xf32>
    %27 = tpu.matmul %25, %26, %cst_23 {dimension_numbers = #tpu.dot_dimension_numbers<[1], [0], [0], [1], [0, 0, 1, 1], [], []>} : vector<8x128xbf16>, vector<128x128xbf16>, vector<8x128xf32> -> vector<8x128xf32>
    %28 = arith.truncf %24 : vector<8x128xf32> to vector<8x128xbf16>
    %c0_24 = arith.constant 0 : index
    %c0_25 = arith.constant 0 : index
    %29 = vector.load %arg11[%c0_24, %c0_25] : memref<128x128xbf16, #tpu.memory_space<vmem>>, vector<128x128xbf16>
    %cst_26 = arith.constant dense<0.000000e+00> : vector<8x128xf32>
    %30 = tpu.matmul %28, %29, %cst_26 {dimension_numbers = #tpu.dot_dimension_numbers<[1], [0], [0], [1], [0, 0, 1, 1], [], []>} : vector<8x128xbf16>, vector<128x128xbf16>, vector<8x128xf32> -> vector<8x128xf32>
    %31 = arith.addf %27, %30 : vector<8x128xf32>
    %c0_27 = arith.constant 0 : index
    %c0_28 = arith.constant 0 : index
    %32 = vector.load %arg12[%c0_27, %c0_28] : memref<1x128xf32, #tpu.memory_space<vmem>>, vector<1x128xf32>
    %33 = vector.broadcast %32 : vector<1x128xf32> to vector<8x128xf32>
    %34 = arith.addf %31, %33 : vector<8x128xf32>
    %c0_29 = arith.constant 0 : index
    %c0_30 = arith.constant 0 : index
    %35 = vector.load %arg13[%c0_29, %c0_30] : memref<8x128xf32, #tpu.memory_space<vmem>>, vector<8x128xf32>
    tpu.vector_store %arg13[%c0_29, %c0_30], %34 {strides = array<i32>} : memref<8x128xf32, #tpu.memory_space<vmem>>, vector<8x128xf32>,
    return
  }
  func.func @transform_0(%arg0: i32, %arg1: memref<8xi32, #tpu.memory_space<smem>>) -> (i32, i32, i32) {
    %c0_i32 = arith.constant 0 : i32
    %c0_i32_0 = arith.constant 0 : i32
    %c0_i32_1 = arith.constant 0 : i32
    return %c0_i32, %arg0, %c0_i32_0 : i32, i32, i32
  }
  func.func @transform_1(%arg0: i32, %arg1: memref<8xi32, #tpu.memory_space<smem>>) -> (i32, i32) {
    %c0_i32 = arith.constant 0 : i32
    %c0_i32_0 = arith.constant 0 : i32
    return %arg0, %c0_i32 : i32, i32
  }
  func.func @transform_2(%arg0: i32, %arg1: memref<8xi32, #tpu.memory_space<smem>>) -> (i32, i32) {
    %c0_i32 = arith.constant 0 : i32
    %c0_i32_0 = arith.constant 0 : i32
    return %arg0, %c0_i32 : i32, i32
  }
  func.func @transform_3(%arg0: i32, %arg1: memref<8xi32, #tpu.memory_space<smem>>) -> (i32, i32) {
    %c0_i32 = arith.constant 0 : i32
    %c0_i32_0 = arith.constant 0 : i32
    %c0_i32_1 = arith.constant 0 : i32
    return %c0_i32, %c0_i32_0 : i32, i32
  }
  func.func @transform_4(%arg0: i32, %arg1: memref<8xi32, #tpu.memory_space<smem>>) -> (i32, i32) {
    %c0_i32 = arith.constant 0 : i32
    %c0_i32_0 = arith.constant 0 : i32
    %c0_i32_1 = arith.constant 0 : i32
    return %c0_i32, %c0_i32_0 : i32, i32
  }
  func.func @transform_5(%arg0: i32, %arg1: memref<8xi32, #tpu.memory_space<smem>>) -> (i32, i32) {
    %c0_i32 = arith.constant 0 : i32
    %c0_i32_0 = arith.constant 0 : i32
    %c0_i32_1 = arith.constant 0 : i32
    return %c0_i32, %c0_i32_0 : i32, i32
  }
  func.func @transform_6(%arg0: i32, %arg1: memref<8xi32, #tpu.memory_space<smem>>) -> (i32, i32) {
    %c0_i32 = arith.constant 0 : i32
    %c0_i32_0 = arith.constant 0 : i32
    %c0_i32_1 = arith.constant 0 : i32
    return %c0_i32, %c0_i32_0 : i32, i32
  }
  func.func @transform_7(%arg0: i32, %arg1: memref<8xi32, #tpu.memory_space<smem>>) -> (i32, i32) {
    %c0_i32 = arith.constant 0 : i32
    %c0_i32_0 = arith.constant 0 : i32
    %c0_i32_1 = arith.constant 0 : i32
    return %c0_i32, %c0_i32_0 : i32, i32
  }
  func.func @transform_8(%arg0: i32, %arg1: memref<8xi32, #tpu.memory_space<smem>>) -> (i32, i32) {
    %c0_i32 = arith.constant 0 : i32
    %c0_i32_0 = arith.constant 0 : i32
    %c0_i32_1 = arith.constant 0 : i32
    return %c0_i32, %c0_i32_0 : i32, i32
  }
  func.func @transform_9(%arg0: i32, %arg1: memref<8xi32, #tpu.memory_space<smem>>) -> (i32, i32) {
    %c0_i32 = arith.constant 0 : i32
    %c0_i32_0 = arith.constant 0 : i32
    %c0_i32_1 = arith.constant 0 : i32
    return %c0_i32, %c0_i32_0 : i32, i32
  }
  func.func @transform_10(%arg0: i32, %arg1: memref<8xi32, #tpu.memory_space<smem>>) -> (i32, i32) {
    %c0_i32 = arith.constant 0 : i32
    %c0_i32_0 = arith.constant 0 : i32
    %c0_i32_1 = arith.constant 0 : i32
    return %c0_i32, %c0_i32_0 : i32, i32
  }
  func.func @transform_11(%arg0: i32, %arg1: memref<8xi32, #tpu.memory_space<smem>>) -> (i32, i32) {
    %c0_i32 = arith.constant 0 : i32
    %c0_i32_0 = arith.constant 0 : i32
    return %arg0, %c0_i32 : i32, i32
  }
}

</mosaic_0001>

<llo_original>
// kernel: tpu_custom_call.1
$region0: #{tpu_custom_call.1}
  #allocation0 [shape = 'u32[]', space=smem, size = 0x4, offset = 0x4, fixed_abs, tag = 'smem constant byte address 0x4 - core index']
  #allocation1 [shape = 'u32[144,128]{1,0:T(1,128)}', space=vmem, size = 0x12000, scoped, tag = 'internal scratch']
  #allocation2 [shape = 'f32[8,8,128]{2,1,0:T(8,128)}', space=vmem, size = 0x8000, scoped, tag = 'scratch operand']
  #allocation3 [shape = 's32[1]{0}', space=sflag, size = 0x4, scoped, tag = 'scoped memory for tpu_custom_call.1']
  #allocation4 [shape = 'u8[512]{0}', space=smem, size = 0x200, scoped, tag = 'prefetched SMEM operand 0']
  %s0 = inlined_call_operand.vmem [shape: s32[8], index: 0, kind: input, shape index: {}]
  %s1 = inlined_call_operand.hbm [shape: bf16[8,8,128], index: 1, kind: input, shape index: {}]
  %s2 = inlined_call_operand.vmem [shape: s32[8,1], index: 2, kind: input, shape index: {}]
  %s3 = inlined_call_operand.vmem [shape: bf16[8,128], index: 3, kind: input, shape index: {}]
  %s4 = inlined_call_operand.hbm [shape: bf16[128,128], index: 4, kind: input, shape index: {}]
  %s5 = inlined_call_operand.hbm [shape: bf16[128,128], index: 5, kind: input, shape index: {}]
  %s6 = inlined_call_operand.vmem [shape: f32[1,128], index: 6, kind: input, shape index: {}]
  %s7 = inlined_call_operand.hbm [shape: bf16[128,128], index: 7, kind: input, shape index: {}]
  %s8 = inlined_call_operand.vmem [shape: f32[1,128], index: 8, kind: input, shape index: {}]
  %s9 = inlined_call_operand.hbm [shape: bf16[128,128], index: 9, kind: input, shape index: {}]
  %s10 = inlined_call_operand.hbm [shape: bf16[128,128], index: 10, kind: input, shape index: {}]
  %s11 = inlined_call_operand.vmem [shape: f32[1,128], index: 11, kind: input, shape index: {}]
  %s12 = inlined_call_operand.hbm [shape: f32[8,128], index: 12, kind: output, shape index: {}]
  %s13 = sld [smem:[#allocation0]]
  $region85: #{tpu_custom_call.1} parent=0
    _
  %s15 = ssub.s32 1, %s13
  %s16 = scalar_select 0, %s15, %s13
  %s17 = sshll.u32 %s0, 4
  %s18 = int_to_ptr.vmem [resolvable:$true] %s17
  %20 = dma.vmem_to_smem %s18, 16, [#allocation4], [#allocation3]
  %21 = dma.done [#allocation3], 16
  %22 = sfence
  $region1: #{tpu_custom_call.1} parent=0
    #allocation5 [shape = 'u8[16384]{0}', space=vmem, size = 0x4000, scoped, tag = 'input window, operand 1, single buffered']
    #allocation6 [shape = 's32[1]{0}', space=sflag, size = 0x4, scoped, tag = 'scoped memory for tpu_custom_call.1']
    #allocation7 [shape = 's32[1]{0}', space=sflag, size = 0x4, scoped, tag = 'scoped memory for tpu_custom_call.1']
    #allocation8 [shape = 'u8[32768]{0}', space=vmem, size = 0x8000, scoped, tag = 'input window, operand 4, single buffered']
    #allocation9 [shape = 's32[1]{0}', space=sflag, size = 0x4, scoped, tag = 'scoped memory for tpu_custom_call.1']
    #allocation10 [shape = 'u8[32768]{0}', space=vmem, size = 0x8000, scoped, tag = 'input window, operand 5, single buffered']
    #allocation11 [shape = 'u8[32768]{0}', space=vmem, size = 0x8000, scoped, tag = 'input window, operand 7, single buffered']
    #allocation12 [shape = 's32[1]{0}', space=sflag, size = 0x4, scoped, tag = 'scoped memory for tpu_custom_call.1']
    #allocation13 [shape = 'u8[32768]{0}', space=vmem, size = 0x8000, scoped, tag = 'input window, operand 9, single buffered']
    #allocation14 [shape = 'u8[32768]{0}', space=vmem, size = 0x8000, scoped, tag = 'input window, operand 10, single buffered']
    #allocation15 [shape = 's32[1]{0}', space=sflag, size = 0x4, scoped, tag = 'scoped memory for tpu_custom_call.1']
    #allocation16 [shape = 'u8[4096]{0}', space=vmem, size = 0x1000, scoped, tag = 'output window, operand 0, single buffered']
    %23 = vsyncpa [#allocation6], 0
    %24 = vsyncpa [#allocation9], 0
    %25 = vsyncpa [#allocation12], 0
    %26 = vsyncpa [#allocation15], 0
    %27 = vsyncpa [#allocation7], 0
    // Predicated region
    $region2: #{tpu_custom_call.1} parent=1 // pred_check
      _
    $region3: #{tpu_custom_call.1} parent=1 // pred_check_branch
      %29 = sbr.rel (0) target = $region5
    $region4: #{tpu_custom_call.1} parent=1 // pred_region
      %s31 = ssub.s32 512, 512
      %32 = vsyncadd [#allocation6], %s31
      %s33 = sshll.u32 [#allocation5], 4
      %s34 = int_to_ptr.vmem [resolvable:$true] %s33
      %39 = dma.hbm_to_vmem [thread:$0]  %s1, 512, %s34, [#allocation6], 64, 64, 4
    $region5: #{tpu_custom_call.1} parent=1 // pred_fallthru
      _
    // Predicated region
    $region6: #{tpu_custom_call.1} parent=1 // pred_check
      _
    $region7: #{tpu_custom_call.1} parent=1 // pred_check_branch
      %41 = sbr.rel (0) target = $region9
    $region8: #{tpu_custom_call.1} parent=1 // pred_region
      _
    $region9: #{tpu_custom_call.1} parent=1 // pred_fallthru
      _
    // Predicated region
    $region10: #{tpu_custom_call.1} parent=1 // pred_check
      _
    $region11: #{tpu_custom_call.1} parent=1 // pred_check_branch
      %43 = sbr.rel (0) target = $region13
    $region12: #{tpu_custom_call.1} parent=1 // pred_region
      _
    $region13: #{tpu_custom_call.1} parent=1 // pred_fallthru
      _
    // Predicated region
    $region14: #{tpu_custom_call.1} parent=1 // pred_check
      _
    $region15: #{tpu_custom_call.1} parent=1 // pred_check_branch
      %45 = sbr.rel (0) target = $region17
    $region16: #{tpu_custom_call.1} parent=1 // pred_region
      %s47 = ssub.s32 1024, 1024
      %48 = vsyncadd [#allocation9], %s47
      %s49 = sshll.u32 [#allocation8], 4
      %s50 = int_to_ptr.vmem [resolvable:$true] %s49
      %55 = dma.hbm_to_vmem [thread:$0]  %s4, 1024, %s50, [#allocation9], 64, 64, 4
    $region17: #{tpu_custom_call.1} parent=1 // pred_fallthru
      _
    // Predicated region
    $region18: #{tpu_custom_call.1} parent=1 // pred_check
      _
    $region19: #{tpu_custom_call.1} parent=1 // pred_check_branch
      %57 = sbr.rel (0) target = $region21
    $region20: #{tpu_custom_call.1} parent=1 // pred_region
      %s59 = ssub.s32 1024, 1024
      %60 = vsyncadd [#allocation9], %s59
      %s61 = sshll.u32 [#allocation10], 4
      %s62 = int_to_ptr.vmem [resolvable:$true] %s61
      %67 = dma.hbm_to_vmem [thread:$0]  %s5, 1024, %s62, [#allocation9], 64, 64, 4
    $region21: #{tpu_custom_call.1} parent=1 // pred_fallthru
      _
    // Predicated region
    $region22: #{tpu_custom_call.1} parent=1 // pred_check
      _
    $region23: #{tpu_custom_call.1} parent=1 // pred_check_branch
      %69 = sbr.rel (0) target = $region25
    $region24: #{tpu_custom_call.1} parent=1 // pred_region
      _
    $region25: #{tpu_custom_call.1} parent=1 // pred_fallthru
      _
    // Predicated region
    $region26: #{tpu_custom_call.1} parent=1 // pred_check
      _
    $region27: #{tpu_custom_call.1} parent=1 // pred_check_branch
      %71 = sbr.rel (0) target = $region29
    $region28: #{tpu_custom_call.1} parent=1 // pred_region
      %s73 = ssub.s32 1024, 1024
      %74 = vsyncadd [#allocation12], %s73
      %s75 = sshll.u32 [#allocation11], 4
      %s76 = int_to_ptr.vmem [resolvable:$true] %s75
      %81 = dma.hbm_to_vmem [thread:$0]  %s7, 1024, %s76, [#allocation12], 64, 64, 4
    $region29: #{tpu_custom_call.1} parent=1 // pred_fallthru
      _
    // Predicated region
    $region30: #{tpu_custom_call.1} parent=1 // pred_check
      _
    $region31: #{tpu_custom_call.1} parent=1 // pred_check_branch
      %83 = sbr.rel (0) target = $region33
    $region32: #{tpu_custom_call.1} parent=1 // pred_region
      _
    $region33: #{tpu_custom_call.1} parent=1 // pred_fallthru
      _
    // Predicated region
    $region34: #{tpu_custom_call.1} parent=1 // pred_check
      _
    $region35: #{tpu_custom_call.1} parent=1 // pred_check_branch
      %85 = sbr.rel (0) target = $region37
    $region36: #{tpu_custom_call.1} parent=1 // pred_region
      %s87 = ssub.s32 1024, 1024
      %88 = vsyncadd [#allocation12], %s87
      %s89 = sshll.u32 [#allocation13], 4
      %s90 = int_to_ptr.vmem [resolvable:$true] %s89
      %95 = dma.hbm_to_vmem [thread:$0]  %s9, 1024, %s90, [#allocation12], 64, 64, 4
    $region37: #{tpu_custom_call.1} parent=1 // pred_fallthru
      _
    // Predicated region
    $region38: #{tpu_custom_call.1} parent=1 // pred_check
      _
    $region39: #{tpu_custom_call.1} parent=1 // pred_check_branch
      %97 = sbr.rel (0) target = $region41
    $region40: #{tpu_custom_call.1} parent=1 // pred_region
      %s99 = ssub.s32 1024, 1024
      %100 = vsyncadd [#allocation15], %s99
      %s101 = sshll.u32 [#allocation14], 4
      %s102 = int_to_ptr.vmem [resolvable:$true] %s101
      %107 = dma.hbm_to_vmem [thread:$0]  %s10, 1024, %s102, [#allocation15], 64, 64, 4
    $region41: #{tpu_custom_call.1} parent=1 // pred_fallthru
      _
    // Predicated region
    $region42: #{tpu_custom_call.1} parent=1 // pred_check
      _
    $region43: #{tpu_custom_call.1} parent=1 // pred_check_branch
      %109 = sbr.rel (0) target = $region45
    $region44: #{tpu_custom_call.1} parent=1 // pred_region
      _
    $region45: #{tpu_custom_call.1} parent=1 // pred_fallthru
      _
    // Predicated region
    $region46: #{tpu_custom_call.1} parent=1 // pred_check
      _
    $region47: #{tpu_custom_call.1} parent=1 // pred_check_branch
      %111 = sbr.rel (0) target = $region49
    $region48: #{tpu_custom_call.1} parent=1 // pred_region
      %112 = dma.done [#allocation6], 512
    $region49: #{tpu_custom_call.1} parent=1 // pred_fallthru
      _
    // Predicated region
    $region50: #{tpu_custom_call.1} parent=1 // pred_check
      _
    $region51: #{tpu_custom_call.1} parent=1 // pred_check_branch
      %114 = sbr.rel (0) target = $region53
    $region52: #{tpu_custom_call.1} parent=1 // pred_region
      %115 = dma.done [#allocation9], 1024
    $region53: #{tpu_custom_call.1} parent=1 // pred_fallthru
      _
    // Predicated region
    $region54: #{tpu_custom_call.1} parent=1 // pred_check
      _
    $region55: #{tpu_custom_call.1} parent=1 // pred_check_branch
      %117 = sbr.rel (0) target = $region57
    $region56: #{tpu_custom_call.1} parent=1 // pred_region
      %118 = dma.done [#allocation9], 1024
    $region57: #{tpu_custom_call.1} parent=1 // pred_fallthru
      _
    // Predicated region
    $region58: #{tpu_custom_call.1} parent=1 // pred_check
      _
    $region59: #{tpu_custom_call.1} parent=1 // pred_check_branch
      %120 = sbr.rel (0) target = $region61
    $region60: #{tpu_custom_call.1} parent=1 // pred_region
      %121 = dma.done [#allocation12], 1024
    $region61: #{tpu_custom_call.1} parent=1 // pred_fallthru
      _
    // Predicated region
    $region62: #{tpu_custom_call.1} parent=1 // pred_check
      _
    $region63: #{tpu_custom_call.1} parent=1 // pred_check_branch
      %123 = sbr.rel (0) target = $region65
    $region64: #{tpu_custom_call.1} parent=1 // pred_region
      %124 = dma.done [#allocation12], 1024
    $region65: #{tpu_custom_call.1} parent=1 // pred_fallthru
      _
    // Predicated region
    $region66: #{tpu_custom_call.1} parent=1 // pred_check
      _
    $region67: #{tpu_custom_call.1} parent=1 // pred_check_branch
      %126 = sbr.rel (0) target = $region69
    $region68: #{tpu_custom_call.1} parent=1 // pred_region
      %127 = dma.done [#allocation15], 1024
    $region69: #{tpu_custom_call.1} parent=1 // pred_fallthru
      _
    %v129 = vld [vmem:[#allocation5] sm:$0xf]
    %v130 = vld [vmem:[#allocation5 + $0x4] sm:$0xf]
    %v131 = vld [vmem:[#allocation5 + $0x8] sm:$0xf]
    %v132 = vld [vmem:[#allocation5 + $0xc] sm:$0xf]
    %v133 = vld [vmem:[#allocation5 + $0x10] sm:$0xf]
    %v134 = vld [vmem:[#allocation5 + $0x14] sm:$0xf]
    %v135 = vld [vmem:[#allocation5 + $0x18] sm:$0xf]
    %v136 = vld [vmem:[#allocation5 + $0x1c] sm:$0xf]
    %v137 = vld [vmem:[#allocation8] sm:$0xf]
    %v138 = vld [vmem:[#allocation8 + $0x4] sm:$0xf]
    %v139 = vld [vmem:[#allocation8 + $0x8] sm:$0xf]
    %v140 = vld [vmem:[#allocation8 + $0xc] sm:$0xf]
    %v141 = vld [vmem:[#allocation8 + $0x10] sm:$0xf]
    %v142 = vld [vmem:[#allocation8 + $0x14] sm:$0xf]
    %v143 = vld [vmem:[#allocation8 + $0x18] sm:$0xf]
    %v144 = vld [vmem:[#allocation8 + $0x1c] sm:$0xf]
    %v145 = vld [vmem:[#allocation8 + $0x20] sm:$0xf]
    %v146 = vld [vmem:[#allocation8 + $0x24] sm:$0xf]
    %v147 = vld [vmem:[#allocation8 + $0x28] sm:$0xf]
    %v148 = vld [vmem:[#allocation8 + $0x2c] sm:$0xf]
    %v149 = vld [vmem:[#allocation8 + $0x30] sm:$0xf]
    %v150 = vld [vmem:[#allocation8 + $0x34] sm:$0xf]
    %v151 = vld [vmem:[#allocation8 + $0x38] sm:$0xf]
    %v152 = vld [vmem:[#allocation8 + $0x3c] sm:$0xf]
    %v153 = vld [vmem:[%s6] sm:$0x1]
    %v155 = vlaneseq
    %v156 = vshrl.u32 %v155, 7
    %v157 = vsub.s32 0, %v156
    %v158 = vrot.slane %v153, %v157
    %v168 = vunpack.c.l.b16 %v129
    %v169 = vunpack.c.l.b16 %v130
    %v170 = vunpack.c.l.b16 %v131
    %v171 = vunpack.c.l.b16 %v132
    %v172 = vunpack.c.l.b16 %v133
    %v173 = vunpack.c.l.b16 %v134
    %v174 = vunpack.c.l.b16 %v135
    %v175 = vunpack.c.l.b16 %v136
    %v176 = vpack.c.b16 %v169, %v168
    %v177 = vpack.c.b16 %v171, %v170
    %v178 = vpack.c.b16 %v173, %v172
    %v179 = vpack.c.b16 %v175, %v174
    %v200 = vunpack.c.l.b16 %v137
    %v201 = vunpack.c.l.b16 %v138
    %v202 = vunpack.c.l.b16 %v139
    %v203 = vunpack.c.l.b16 %v140
    %v204 = vunpack.c.l.b16 %v141
    %v205 = vunpack.c.l.b16 %v142
    %v206 = vunpack.c.l.b16 %v143
    %v207 = vunpack.c.l.b16 %v144
    %v208 = vunpack.c.l.b16 %v145
    %v209 = vunpack.c.l.b16 %v146
    %v210 = vunpack.c.l.b16 %v147
    %v211 = vunpack.c.l.b16 %v148
    %v212 = vunpack.c.l.b16 %v149
    %v213 = vunpack.c.l.b16 %v150
    %v214 = vunpack.c.l.b16 %v151
    %v215 = vunpack.c.l.b16 %v152
    %v216 = vpack.c.b16 %v201, %v200
    %v217 = vpack.c.b16 %v203, %v202
    %v218 = vpack.c.b16 %v205, %v204
    %v219 = vpack.c.b16 %v207, %v206
    %v220 = vpack.c.b16 %v209, %v208
    %v221 = vpack.c.b16 %v211, %v210
    %v222 = vpack.c.b16 %v213, %v212
    %v223 = vpack.c.b16 %v215, %v214
    %232 = vmatprep.subr.bf16.mxu0 0
    %233 = vmatpush1.bf16.msra.mxu0 %v216
    %234 = vmatprep.subr.bf16.mxu0 0
    %235 = vmatpush1.bf16.msra.mxu0 %v217
    %236 = vmatprep.subr.bf16.mxu0 0
    %237 = vmatpush1.bf16.msra.mxu0 %v218
    %238 = vmatprep.subr.bf16.mxu0 0
    %239 = vmatpush1.bf16.msra.mxu0 %v219
    %240 = vmatprep.subr.bf16.mxu0 0
    %241 = vmatpush1.bf16.msra.mxu0 %v220
    %242 = vmatprep.subr.bf16.mxu0 0
    %243 = vmatpush1.bf16.msra.mxu0 %v221
    %244 = vmatprep.subr.bf16.mxu0 0
    %245 = vmatpush1.bf16.msra.mxu0 %v222
    %246 = vmatprep.subr.bf16.mxu0 0
    %247 = vmatpush1.bf16.msra.mxu0 %v223
    %248 = vmatprep.subr.bf16.mxu0 0
    %249 = vmatpush1.bf16.msra.mxu0 0
    %250 = vmatprep.subr.bf16.mxu0 0
    %251 = vmatpush1.bf16.msra.mxu0 0
    %252 = vmatprep.subr.bf16.mxu0 0
    %253 = vmatpush1.bf16.msra.mxu0 0
    %254 = vmatprep.subr.bf16.mxu0 0
    %255 = vmatpush1.bf16.msra.mxu0 0
    %256 = vmatprep.subr.bf16.mxu0 0
    %257 = vmatpush1.bf16.msra.mxu0 0
    %258 = vmatprep.subr.bf16.mxu0 0
    %259 = vmatpush1.bf16.msra.mxu0 0
    %260 = vmatprep.subr.bf16.mxu0 0
    %261 = vmatpush1.bf16.msra.mxu0 0
    %262 = vmatprep.subr.bf16.mxu0 0
    %263 = vmatpush1.bf16.msra.mxu0 0
    %264 = vmatprep.mubr.bf16.mxu0 0
    %265 = vmatmul.mubr.bf16.gmra.mrb[0].mxu0 %v176
    %v266 = vpop.f32.mrb[0].mxu0
    %v267 = vadd.f32 %v158, %v266
    %v268 = vpop.f32.mrb[0].mxu0
    %v269 = vpop.f32.mrb[0].mxu0
    %v270 = vadd.f32 %v158, %v269
    %v271 = vpop.f32.mrb[0].mxu0
    %272 = vmatprep.mubr.bf16.mxu0 0
    %273 = vmatmul.mubr.bf16.gmra.mrb[0].mxu0 %v177
    %v274 = vpop.f32.mrb[0].mxu0
    %v275 = vadd.f32 %v158, %v274
    %v276 = vpop.f32.mrb[0].mxu0
    %v277 = vpop.f32.mrb[0].mxu0
    %v278 = vadd.f32 %v158, %v277
    %v279 = vpop.f32.mrb[0].mxu0
    %280 = vmatprep.mubr.bf16.mxu0 0
    %281 = vmatmul.mubr.bf16.gmra.mrb[0].mxu0 %v178
    %v282 = vpop.f32.mrb[0].mxu0
    %v283 = vadd.f32 %v158, %v282
    %v284 = vpop.f32.mrb[0].mxu0
    %v285 = vpop.f32.mrb[0].mxu0
    %v286 = vadd.f32 %v158, %v285
    %v287 = vpop.f32.mrb[0].mxu0
    %288 = vmatprep.mubr.bf16.mxu0 0
    %289 = vmatmul.mubr.bf16.gmra.mrb[0].mxu0 %v179
    %v290 = vpop.f32.mrb[0].mxu0
    %v291 = vadd.f32 %v158, %v290
    %v292 = vpop.f32.mrb[0].mxu0
    %v293 = vpop.f32.mrb[0].mxu0
    %v294 = vadd.f32 %v158, %v293
    %v295 = vpop.f32.mrb[0].mxu0
    %296 = vdwg.mxu0
    %297 = vst [vmem:[#allocation2] sm:$0xff] %v267
    %298 = vst [vmem:[#allocation2 + $0x8] sm:$0xff] %v270
    %299 = vst [vmem:[#allocation2 + $0x10] sm:$0xff] %v275
    %300 = vst [vmem:[#allocation2 + $0x18] sm:$0xff] %v278
    %301 = vst [vmem:[#allocation2 + $0x20] sm:$0xff] %v283
    %302 = vst [vmem:[#allocation2 + $0x28] sm:$0xff] %v286
    %303 = vst [vmem:[#allocation2 + $0x30] sm:$0xff] %v291
    %304 = vst [vmem:[#allocation2 + $0x38] sm:$0xff] %v294
    %s305 = smul.u32 0, 8
    %s306 = sld [smem:[#allocation4 + %s305]]
    %v307 = vld [vmem:[%s2] sm:$0xff]
    %v308 = vld [vmem:[#allocation10] sm:$0xf]
    %v309 = vld [vmem:[#allocation10 + $0x4] sm:$0xf]
    %v310 = vld [vmem:[#allocation10 + $0x8] sm:$0xf]
    %v311 = vld [vmem:[#allocation10 + $0xc] sm:$0xf]
    %v312 = vld [vmem:[#allocation10 + $0x10] sm:$0xf]
    %v313 = vld [vmem:[#allocation10 + $0x14] sm:$0xf]
    %v314 = vld [vmem:[#allocation10 + $0x18] sm:$0xf]
    %v315 = vld [vmem:[#allocation10 + $0x1c] sm:$0xf]
    %v316 = vld [vmem:[#allocation10 + $0x20] sm:$0xf]
    %v317 = vld [vmem:[#allocation10 + $0x24] sm:$0xf]
    %v318 = vld [vmem:[#allocation10 + $0x28] sm:$0xf]
    %v319 = vld [vmem:[#allocation10 + $0x2c] sm:$0xf]
    %v320 = vld [vmem:[#allocation10 + $0x30] sm:$0xf]
    %v321 = vld [vmem:[#allocation10 + $0x34] sm:$0xf]
    %v322 = vld [vmem:[#allocation10 + $0x38] sm:$0xf]
    %v323 = vld [vmem:[#allocation10 + $0x3c] sm:$0xf]
    // While loop
    $region70: #{tpu_custom_call.1} parent=1 // loop_pre_header
      _
    $region71: #{tpu_custom_call.1} parent=1 // loop_header
      %s325 = sphi 0, %s327
      %p326 = scmp.ge.s32.totalorder %s325, %s306
      %v330 = vphi 0.0, %v432
    $region72: #{tpu_custom_call.1} parent=1 // loop_header_branch
      %329 = sbr.rel (%p326) target = $region76
    $region73: #{tpu_custom_call.1} parent=1 // loop_body
      %s331 = smul.u32 %s325, 8
      %s332 = scalar_lea.vmem [#allocation2], %s331
      %v333 = vld [vmem:[%s332] sm:$0xff]
      %v334 = vpack.c.bf16 %v330, %v330
      %v351 = vunpack.c.l.b16 %v308
      %v352 = vunpack.c.l.b16 %v309
      %v353 = vunpack.c.l.b16 %v310
      %v354 = vunpack.c.l.b16 %v311
      %v355 = vunpack.c.l.b16 %v312
      %v356 = vunpack.c.l.b16 %v313
      %v357 = vunpack.c.l.b16 %v314
      %v358 = vunpack.c.l.b16 %v315
      %v359 = vunpack.c.l.b16 %v316
      %v360 = vunpack.c.l.b16 %v317
      %v361 = vunpack.c.l.b16 %v318
      %v362 = vunpack.c.l.b16 %v319
      %v363 = vunpack.c.l.b16 %v320
      %v364 = vunpack.c.l.b16 %v321
      %v365 = vunpack.c.l.b16 %v322
      %v366 = vunpack.c.l.b16 %v323
      %v367 = vpack.c.b16 %v352, %v351
      %v368 = vpack.c.b16 %v354, %v353
      %v369 = vpack.c.b16 %v356, %v355
      %v370 = vpack.c.b16 %v358, %v357
      %v371 = vpack.c.b16 %v360, %v359
      %v372 = vpack.c.b16 %v362, %v361
      %v373 = vpack.c.b16 %v364, %v363
      %v374 = vpack.c.b16 %v366, %v365
      %383 = vmatprep.subr.bf16.mxu0 0
      %384 = vmatpush1.bf16.msra.mxu0 %v367
      %385 = vmatprep.subr.bf16.mxu0 0
      %386 = vmatpush1.bf16.msra.mxu0 %v368
      %387 = vmatprep.subr.bf16.mxu0 0
      %388 = vmatpush1.bf16.msra.mxu0 %v369
      %389 = vmatprep.subr.bf16.mxu0 0
      %390 = vmatpush1.bf16.msra.mxu0 %v370
      %391 = vmatprep.subr.bf16.mxu0 0
      %392 = vmatpush1.bf16.msra.mxu0 %v371
      %393 = vmatprep.subr.bf16.mxu0 0
      %394 = vmatpush1.bf16.msra.mxu0 %v372
      %395 = vmatprep.subr.bf16.mxu0 0
      %396 = vmatpush1.bf16.msra.mxu0 %v373
      %397 = vmatprep.subr.bf16.mxu0 0
      %398 = vmatpush1.bf16.msra.mxu0 %v374
      %399 = vmatprep.subr.bf16.mxu0 0
      %400 = vmatpush1.bf16.msra.mxu0 0
      %401 = vmatprep.subr.bf16.mxu0 0
      %402 = vmatpush1.bf16.msra.mxu0 0
      %403 = vmatprep.subr.bf16.mxu0 0
      %404 = vmatpush1.bf16.msra.mxu0 0
      %405 = vmatprep.subr.bf16.mxu0 0
      %406 = vmatpush1.bf16.msra.mxu0 0
      %407 = vmatprep.subr.bf16.mxu0 0
      %408 = vmatpush1.bf16.msra.mxu0 0
      %409 = vmatprep.subr.bf16.mxu0 0
      %410 = vmatpush1.bf16.msra.mxu0 0
      %411 = vmatprep.subr.bf16.mxu0 0
      %412 = vmatpush1.bf16.msra.mxu0 0
      %413 = vmatprep.subr.bf16.mxu0 0
      %414 = vmatpush1.bf16.msra.mxu0 0
      %415 = vmatprep.mubr.bf16.mxu0 0
      %416 = vmatmul.mubr.bf16.gmra.mrb[0].mxu0 %v334
      %v417 = vpop.f32.mrb[0].mxu0
      %v418 = vadd.f32 0.0, %v417
      %v419 = vpop.f32.mrb[0].mxu0
      %v420 = vpop.f32.mrb[0].mxu0
      %v421 = vpop.f32.mrb[0].mxu0
      %422 = vdwg.mxu0
      %v423 = vadd.f32 %v333, %v418
      %v424 = vtanh.pop %v423
      %v425 = vstv %s325
      %vm426 = vcmp.lt.s32.totalorder %v425, %v307
      %v427 = vsel %vm426, 1, 0
      %428 = vset.pattern.permute.xlu0 0
      %429 = vperm.xlu0 %428, %v427
      %v430 = vpop.permute.xlu0 %429
      %vm431 = vcmp.eq.s32.totalorder %v430, 1
      %v432 = vsel %vm431, %v424, %v330
    $region74: #{tpu_custom_call.1} parent=1 // loop_footer
      %s327 = sadd.s32 %s325, 1
    $region75: #{tpu_custom_call.1} parent=1 // loop_footer_branch
      %324 = sbr.rel target = $region71
    $region76: #{tpu_custom_call.1} parent=1 // loop_exit
      _
    %v433 = vld [vmem:[%s3] sm:$0xf]
    %v434 = vld [vmem:[#allocation11] sm:$0xf]
    %v435 = vld [vmem:[#allocation11 + $0x4] sm:$0xf]
    %v436 = vld [vmem:[#allocation11 + $0x8] sm:$0xf]
    %v437 = vld [vmem:[#allocation11 + $0xc] sm:$0xf]
    %v438 = vld [vmem:[#allocation11 + $0x10] sm:$0xf]
    %v439 = vld [vmem:[#allocation11 + $0x14] sm:$0xf]
    %v440 = vld [vmem:[#allocation11 + $0x18] sm:$0xf]
    %v441 = vld [vmem:[#allocation11 + $0x1c] sm:$0xf]
    %v442 = vld [vmem:[#allocation11 + $0x20] sm:$0xf]
    %v443 = vld [vmem:[#allocation11 + $0x24] sm:$0xf]
    %v444 = vld [vmem:[#allocation11 + $0x28] sm:$0xf]
    %v445 = vld [vmem:[#allocation11 + $0x2c] sm:$0xf]
    %v446 = vld [vmem:[#allocation11 + $0x30] sm:$0xf]
    %v447 = vld [vmem:[#allocation11 + $0x34] sm:$0xf]
    %v448 = vld [vmem:[#allocation11 + $0x38] sm:$0xf]
    %v449 = vld [vmem:[#allocation11 + $0x3c] sm:$0xf]
    %v450 = vld [vmem:[%s8] sm:$0x1]
    %v452 = vlaneseq
    %v453 = vshrl.u32 %v452, 7
    %v454 = vsub.s32 0, %v453
    %v455 = vrot.slane %v450, %v454
    %v473 = vunpack.c.l.b16 %v434
    %v474 = vunpack.c.l.b16 %v435
    %v475 = vunpack.c.l.b16 %v436
    %v476 = vunpack.c.l.b16 %v437
    %v477 = vunpack.c.l.b16 %v438
    %v478 = vunpack.c.l.b16 %v439
    %v479 = vunpack.c.l.b16 %v440
    %v480 = vunpack.c.l.b16 %v441
    %v481 = vunpack.c.l.b16 %v442
    %v482 = vunpack.c.l.b16 %v443
    %v483 = vunpack.c.l.b16 %v444
    %v484 = vunpack.c.l.b16 %v445
    %v485 = vunpack.c.l.b16 %v446
    %v486 = vunpack.c.l.b16 %v447
    %v487 = vunpack.c.l.b16 %v448
    %v488 = vunpack.c.l.b16 %v449
    %v489 = vpack.c.b16 %v474, %v473
    %v490 = vpack.c.b16 %v476, %v475
    %v491 = vpack.c.b16 %v478, %v477
    %v492 = vpack.c.b16 %v480, %v479
    %v493 = vpack.c.b16 %v482, %v481
    %v494 = vpack.c.b16 %v484, %v483
    %v495 = vpack.c.b16 %v486, %v485
    %v496 = vpack.c.b16 %v488, %v487
    %505 = vmatprep.subr.bf16.mxu0 0
    %506 = vmatpush1.bf16.msra.mxu0 %v489
    %507 = vmatprep.subr.bf16.mxu0 0
    %508 = vmatpush1.bf16.msra.mxu0 %v490
    %509 = vmatprep.subr.bf16.mxu0 0
    %510 = vmatpush1.bf16.msra.mxu0 %v491
    %511 = vmatprep.subr.bf16.mxu0 0
    %512 = vmatpush1.bf16.msra.mxu0 %v492
    %513 = vmatprep.subr.bf16.mxu0 0
    %514 = vmatpush1.bf16.msra.mxu0 %v493
    %515 = vmatprep.subr.bf16.mxu0 0
    %516 = vmatpush1.bf16.msra.mxu0 %v494
    %517 = vmatprep.subr.bf16.mxu0 0
    %518 = vmatpush1.bf16.msra.mxu0 %v495
    %519 = vmatprep.subr.bf16.mxu0 0
    %520 = vmatpush1.bf16.msra.mxu0 %v496
    %521 = vmatprep.subr.bf16.mxu0 0
    %522 = vmatpush1.bf16.msra.mxu0 0
    %523 = vmatprep.subr.bf16.mxu0 0
    %524 = vmatpush1.bf16.msra.mxu0 0
    %525 = vmatprep.subr.bf16.mxu0 0
    %526 = vmatpush1.bf16.msra.mxu0 0
    %527 = vmatprep.subr.bf16.mxu0 0
    %528 = vmatpush1.bf16.msra.mxu0 0
    %529 = vmatprep.subr.bf16.mxu0 0
    %530 = vmatpush1.bf16.msra.mxu0 0
    %531 = vmatprep.subr.bf16.mxu0 0
    %532 = vmatpush1.bf16.msra.mxu0 0
    %533 = vmatprep.subr.bf16.mxu0 0
    %534 = vmatpush1.bf16.msra.mxu0 0
    %535 = vmatprep.subr.bf16.mxu0 0
    %536 = vmatpush1.bf16.msra.mxu0 0
    %537 = vmatprep.mubr.bf16.mxu0 0
    %538 = vmatmul.mubr.bf16.gmra.mrb[0].mxu0 %v433
    %v539 = vpop.f32.mrb[0].mxu0
    %v540 = vadd.f32 %v455, %v539
    %v541 = vpop.f32.mrb[0].mxu0
    %v542 = vpop.f32.mrb[0].mxu0
    %v543 = vpop.f32.mrb[0].mxu0
    %544 = vdwg.mxu0
    %v545 = vtanh.pop %v540
    %v546 = vpack.c.bf16 %v330, %v330
    %v547 = vld [vmem:[#allocation13] sm:$0xf]
    %v548 = vld [vmem:[#allocation13 + $0x4] sm:$0xf]
    %v549 = vld [vmem:[#allocation13 + $0x8] sm:$0xf]
    %v550 = vld [vmem:[#allocation13 + $0xc] sm:$0xf]
    %v551 = vld [vmem:[#allocation13 + $0x10] sm:$0xf]
    %v552 = vld [vmem:[#allocation13 + $0x14] sm:$0xf]
    %v553 = vld [vmem:[#allocation13 + $0x18] sm:$0xf]
    %v554 = vld [vmem:[#allocation13 + $0x1c] sm:$0xf]
    %v555 = vld [vmem:[#allocation13 + $0x20] sm:$0xf]
    %v556 = vld [vmem:[#allocation13 + $0x24] sm:$0xf]
    %v557 = vld [vmem:[#allocation13 + $0x28] sm:$0xf]
    %v558 = vld [vmem:[#allocation13 + $0x2c] sm:$0xf]
    %v559 = vld [vmem:[#allocation13 + $0x30] sm:$0xf]
    %v560 = vld [vmem:[#allocation13 + $0x34] sm:$0xf]
    %v561 = vld [vmem:[#allocation13 + $0x38] sm:$0xf]
    %v562 = vld [vmem:[#allocation13 + $0x3c] sm:$0xf]
    %v563 = vpack.c.bf16 %v545, %v545
    %v564 = vld [vmem:[#allocation14] sm:$0xf]
    %v565 = vld [vmem:[#allocation14 + $0x4] sm:$0xf]
    %v566 = vld [vmem:[#allocation14 + $0x8] sm:$0xf]
    %v567 = vld [vmem:[#allocation14 + $0xc] sm:$0xf]
    %v568 = vld [vmem:[#allocation14 + $0x10] sm:$0xf]
    %v569 = vld [vmem:[#allocation14 + $0x14] sm:$0xf]
    %v570 = vld [vmem:[#allocation14 + $0x18] sm:$0xf]
    %v571 = vld [vmem:[#allocation14 + $0x1c] sm:$0xf]
    %v572 = vld [vmem:[#allocation14 + $0x20] sm:$0xf]
    %v573 = vld [vmem:[#allocation14 + $0x24] sm:$0xf]
    %v574 = vld [vmem:[#allocation14 + $0x28] sm:$0xf]
    %v575 = vld [vmem:[#allocation14 + $0x2c] sm:$0xf]
    %v576 = vld [vmem:[#allocation14 + $0x30] sm:$0xf]
    %v577 = vld [vmem:[#allocation14 + $0x34] sm:$0xf]
    %v578 = vld [vmem:[#allocation14 + $0x38] sm:$0xf]
    %v579 = vld [vmem:[#allocation14 + $0x3c] sm:$0xf]
    %v596 = vunpack.c.l.b16 %v564
    %v597 = vunpack.c.l.b16 %v565
    %v598 = vunpack.c.l.b16 %v566
    %v599 = vunpack.c.l.b16 %v567
    %v600 = vunpack.c.l.b16 %v568
    %v601 = vunpack.c.l.b16 %v569
    %v602 = vunpack.c.l.b16 %v570
    %v603 = vunpack.c.l.b16 %v571
    %v604 = vunpack.c.l.b16 %v572
    %v605 = vunpack.c.l.b16 %v573
    %v606 = vunpack.c.l.b16 %v574
    %v607 = vunpack.c.l.b16 %v575
    %v608 = vunpack.c.l.b16 %v576
    %v609 = vunpack.c.l.b16 %v577
    %v610 = vunpack.c.l.b16 %v578
    %v611 = vunpack.c.l.b16 %v579
    %v612 = vpack.c.b16 %v597, %v596
    %v613 = vpack.c.b16 %v599, %v598
    %v614 = vpack.c.b16 %v601, %v600
    %v615 = vpack.c.b16 %v603, %v602
    %v616 = vpack.c.b16 %v605, %v604
    %v617 = vpack.c.b16 %v607, %v606
    %v618 = vpack.c.b16 %v609, %v608
    %v619 = vpack.c.b16 %v611, %v610
    %628 = vmatprep.subr.bf16.mxu0 0
    %629 = vmatpush1.bf16.msra.mxu0 %v612
    %630 = vmatprep.subr.bf16.mxu0 0
    %631 = vmatpush1.bf16.msra.mxu0 %v613
    %632 = vmatprep.subr.bf16.mxu0 0
    %633 = vmatpush1.bf16.msra.mxu0 %v614
    %634 = vmatprep.subr.bf16.mxu0 0
    %635 = vmatpush1.bf16.msra.mxu0 %v615
    %636 = vmatprep.subr.bf16.mxu0 0
    %637 = vmatpush1.bf16.msra.mxu0 %v616
    %638 = vmatprep.subr.bf16.mxu0 0
    %639 = vmatpush1.bf16.msra.mxu0 %v617
    %640 = vmatprep.subr.bf16.mxu0 0
    %641 = vmatpush1.bf16.msra.mxu0 %v618
    %642 = vmatprep.subr.bf16.mxu0 0
    %643 = vmatpush1.bf16.msra.mxu0 %v619
    %644 = vmatprep.subr.bf16.mxu0 0
    %645 = vmatpush1.bf16.msra.mxu0 0
    %646 = vmatprep.subr.bf16.mxu0 0
    %647 = vmatpush1.bf16.msra.mxu0 0
    %648 = vmatprep.subr.bf16.mxu0 0
    %649 = vmatpush1.bf16.msra.mxu0 0
    %650 = vmatprep.subr.bf16.mxu0 0
    %651 = vmatpush1.bf16.msra.mxu0 0
    %652 = vmatprep.subr.bf16.mxu0 0
    %653 = vmatpush1.bf16.msra.mxu0 0
    %654 = vmatprep.subr.bf16.mxu0 0
    %655 = vmatpush1.bf16.msra.mxu0 0
    %656 = vmatprep.subr.bf16.mxu0 0
    %657 = vmatpush1.bf16.msra.mxu0 0
    %658 = vmatprep.subr.bf16.mxu0 0
    %659 = vmatpush1.bf16.msra.mxu0 0
    %660 = vmatprep.mubr.bf16.mxu0 0
    %661 = vmatmul.mubr.bf16.gmra.mrb[0].mxu0 %v563
    %v662 = vpop.f32.mrb[0].mxu0
    %v663 = vadd.f32 0.0, %v662
    %v664 = vpop.f32.mrb[0].mxu0
    %v665 = vpop.f32.mrb[0].mxu0
    %v666 = vpop.f32.mrb[0].mxu0
    %667 = vdwg.mxu0
    %v684 = vunpack.c.l.b16 %v547
    %v685 = vunpack.c.l.b16 %v548
    %v686 = vunpack.c.l.b16 %v549
    %v687 = vunpack.c.l.b16 %v550
    %v688 = vunpack.c.l.b16 %v551
    %v689 = vunpack.c.l.b16 %v552
    %v690 = vunpack.c.l.b16 %v553
    %v691 = vunpack.c.l.b16 %v554
    %v692 = vunpack.c.l.b16 %v555
    %v693 = vunpack.c.l.b16 %v556
    %v694 = vunpack.c.l.b16 %v557
    %v695 = vunpack.c.l.b16 %v558
    %v696 = vunpack.c.l.b16 %v559
    %v697 = vunpack.c.l.b16 %v560
    %v698 = vunpack.c.l.b16 %v561
    %v699 = vunpack.c.l.b16 %v562
    %v700 = vpack.c.b16 %v685, %v684
    %v701 = vpack.c.b16 %v687, %v686
    %v702 = vpack.c.b16 %v689, %v688
    %v703 = vpack.c.b16 %v691, %v690
    %v704 = vpack.c.b16 %v693, %v692
    %v705 = vpack.c.b16 %v695, %v694
    %v706 = vpack.c.b16 %v697, %v696
    %v707 = vpack.c.b16 %v699, %v698
    %716 = vmatprep.subr.bf16.mxu0 0
    %717 = vmatpush1.bf16.msra.mxu0 %v700
    %718 = vmatprep.subr.bf16.mxu0 0
    %719 = vmatpush1.bf16.msra.mxu0 %v701
    %720 = vmatprep.subr.bf16.mxu0 0
    %721 = vmatpush1.bf16.msra.mxu0 %v702
    %722 = vmatprep.subr.bf16.mxu0 0
    %723 = vmatpush1.bf16.msra.mxu0 %v703
    %724 = vmatprep.subr.bf16.mxu0 0
    %725 = vmatpush1.bf16.msra.mxu0 %v704
    %726 = vmatprep.subr.bf16.mxu0 0
    %727 = vmatpush1.bf16.msra.mxu0 %v705
    %728 = vmatprep.subr.bf16.mxu0 0
    %729 = vmatpush1.bf16.msra.mxu0 %v706
    %730 = vmatprep.subr.bf16.mxu0 0
    %731 = vmatpush1.bf16.msra.mxu0 %v707
    %732 = vmatprep.subr.bf16.mxu0 0
    %733 = vmatpush1.bf16.msra.mxu0 0
    %734 = vmatprep.subr.bf16.mxu0 0
    %735 = vmatpush1.bf16.msra.mxu0 0
    %736 = vmatprep.subr.bf16.mxu0 0
    %737 = vmatpush1.bf16.msra.mxu0 0
    %738 = vmatprep.subr.bf16.mxu0 0
    %739 = vmatpush1.bf16.msra.mxu0 0
    %740 = vmatprep.subr.bf16.mxu0 0
    %741 = vmatpush1.bf16.msra.mxu0 0
    %742 = vmatprep.subr.bf16.mxu0 0
    %743 = vmatpush1.bf16.msra.mxu0 0
    %744 = vmatprep.subr.bf16.mxu0 0
    %745 = vmatpush1.bf16.msra.mxu0 0
    %746 = vmatprep.subr.bf16.mxu0 0
    %747 = vmatpush1.bf16.msra.mxu0 0
    %748 = vmatprep.mubr.bf16.mxu0 0
    %749 = vmatmul.mubr.bf16.gmra.mrb[0].mxu0 %v546
    %v750 = vpop.f32.mrb[0].mxu0
    %v751 = vadd.f32 %v663, %v750
    %v752 = vpop.f32.mrb[0].mxu0
    %v753 = vpop.f32.mrb[0].mxu0
    %v754 = vpop.f32.mrb[0].mxu0
    %755 = vdwg.mxu0
    %v756 = vld [vmem:[%s11] sm:$0x1]
    %v758 = vlaneseq
    %v759 = vshrl.u32 %v758, 7
    %v760 = vsub.s32 0, %v759
    %v761 = vrot.slane %v756, %v760
    %v763 = vadd.f32 %v751, %v761
    %764 = vst [vmem:[#allocation16] sm:$0xff] %v763
    // Predicated region
    $region77: #{tpu_custom_call.1} parent=1 // pred_check
      _
    $region78: #{tpu_custom_call.1} parent=1 // pred_check_branch
      %766 = sbr.rel (0) target = $region80
    $region79: #{tpu_custom_call.1} parent=1 // pred_region
      %s768 = ssub.s32 128, 128
      %769 = vsyncadd [#allocation7], %s768
      %s771 = sshll.u32 [#allocation16], 4
      %s772 = int_to_ptr.vmem [resolvable:$true] %s771
      %774 = dma.vmem_to_hbm [thread:$0]  %s772, 128, %s12, [#allocation7]
    $region80: #{tpu_custom_call.1} parent=1 // pred_fallthru
      _
    // Predicated region
    $region81: #{tpu_custom_call.1} parent=1 // pred_check
      _
    $region82: #{tpu_custom_call.1} parent=1 // pred_check_branch
      %776 = sbr.rel (0) target = $region84
    $region83: #{tpu_custom_call.1} parent=1 // pred_region
      %777 = dma.done [#allocation7], 128
    $region84: #{tpu_custom_call.1} parent=1 // pred_fallthru
      _
    %778 = vsyncpa [#allocation6], 1
    %779 = vsyncpa [#allocation9], 1
    %780 = vsyncpa [#allocation12], 1
    %781 = vsyncpa [#allocation15], 1
    %782 = vsyncpa [#allocation7], 1

</llo_original>
